<compile_context>
chip_gen: v5e
topology: v5e:2x2
jax: 0.10.0
libtpu: 0.0.40
codegen_flags: <defaults>
</compile_context>

<pallas_src>
import jax
import jax.numpy as jnp
from jax.experimental import pallas as pl
from jax.experimental.pallas import tpu as pltpu


def mixer_kernel(w_ref, ha_ref, hb_ref, o_ref):
    # w_ref:  VMEM (1, H)  f32 lane-dense score-MLP weight row
    # ha_ref / hb_ref / o_ref: VMEM (tn, H) row tiles in the input dtype
    ha = ha_ref[...]
    hb = hb_ref[...]
    d = ha - hb                                             # (tn, H), input dtype
    # s = (h_A - h_B) @ w : VPU multiply + XLU lane-reduce, accumulated in f32
    # (no width-1 MXU matvec, no strided (H, 1) column DMA).
    s = jnp.sum(d.astype(jnp.float32) * w_ref[...], axis=-1, keepdims=True)  # (tn, 1)
    # 2-way softmax weight of A == sigmoid(s_A - s_B); lowers to EUP.
    g = jax.nn.sigmoid(s)                                   # (tn, 1) f32
    o_ref[...] = (hb + g.astype(d.dtype) * d).astype(o_ref.dtype)


def _sublane_quantum(itemsize):
    # Rows per packed (sublane, lane) tile: 8 for 32-bit, 16 for 16-bit, 32 for 8-bit.
    return 8 * max(1, 4 // max(1, itemsize))


def _vmem_capacity_bytes():
    try:
        return int(pltpu.get_tpu_info().vmem_capacity_bytes)
    except Exception:
        return 64 << 20          # conservative (v7x-sized) fallback


def _pick_tile_rows(n_rows, hidden, itemsize, target_tile_bytes, min_tile_bytes=1 << 20):
    """Row-tile size: byte-targeted, >=2 (prefer >=8) grid steps, packing-aligned."""
    q = _sublane_quantum(itemsize)
    if n_rows <= q:
        return n_rows                                       # single full-array block
    row_bytes = hidden * itemsize
    tn = max(q, target_tile_bytes // row_bytes)             # bytes-based target
    # Prefer >= 8 grid steps (so v7x's 2 TensorCores both get work), but don't
    # shrink tiles below ~min_tile_bytes chasing that; always guarantee >= 2 steps.
    rows_for_8 = pl.cdiv(n_rows, 8)
    rows_for_2 = pl.cdiv(n_rows, 2)
    min_rows = max(q, min_tile_bytes // row_bytes)
    tn = min(tn, max(rows_for_8, min_rows), rows_for_2, n_rows)
    tn = max(q, tn - tn % q)                                # sublane-packing quantum
    return tn


def _row_tile_spec(tn, hidden, buffers):
    if buffers > 2:
        try:
            return pl.BlockSpec((tn, hidden), lambda i: (i, 0),
                                pipeline_mode=pl.Buffered(buffers))
        except Exception:
            pass                                            # fall back to default 2-deep
    return pl.BlockSpec((tn, hidden), lambda i: (i, 0))


def attention_fusion_mixer(h_a, h_b, weight, bias=None, *, tn=None):
    """h_a, h_b: (N, H). weight: (1, H) (PyTorch Linear layout). bias: (1,).

    Note: the bias is accepted for interface parity but mathematically cancels in
    the 2-way softmax (softmax([x+b, y+b]) == softmax([x, y])), so it is unused.
    """
    del bias
    N, H = h_a.shape
    assert h_b.shape == (N, H)
    assert H % 128 == 0, "hidden dim must be a multiple of 128 lanes"

    dtype = h_a.dtype
    itemsize = jnp.dtype(dtype).itemsize
    q = _sublane_quantum(itemsize)

    vmem_cap = _vmem_capacity_bytes()
    vmem_ceiling = (vmem_cap * 7) // 8       # never request all of physical VMEM

    if tn is None:
        # ~8 MiB input tiles on 128 MiB-VMEM parts (v5e/v6e), ~4 MiB on 64 MiB (v7x).
        target_tile_bytes = (8 << 20) if vmem_cap >= (96 << 20) else (4 << 20)
        tn = _pick_tile_rows(N, H, itemsize, target_tile_bytes)
    tn = max(1, min(tn, N))

    def footprint(rows, in_buffers):
        tile = rows * H * itemsize
        f32_tile = rows * H * 4
        # buffered h_A/h_B + double-buffered out, plus ~2 f32 + 1 dtype intermediates
        # (d, score product, gated sum) and headroom for Mosaic internal scratch.
        return (2 * in_buffers + 2) * tile + 2 * f32_tile + tile + (4 << 20)

    steps = pl.cdiv(N, tn)
    tile_bytes = tn * H * itemsize
    # 3-deep input buffering when the grid has many small steps (fixed DMA setup
    # latency otherwise becomes a visible fraction of the per-step time).
    in_buffers = 3 if (steps >= 4 and tile_bytes <= (2 << 20)) else 2

    # Shrink the tile if the per-step footprint would not fit under the ceiling.
    while tn > q and footprint(tn, in_buffers) > vmem_ceiling:
        tn = max(q, (tn // 2) - ((tn // 2) % q))
    steps = pl.cdiv(N, tn)

    vmem_limit = int(min(vmem_ceiling, max(16 << 20, footprint(tn, in_buffers))))

    w_row = jnp.asarray(weight, jnp.float32).reshape(1, H)  # lane-dense weight row

    return pl.pallas_call(
        mixer_kernel,
        out_shape=jax.ShapeDtypeStruct((N, H), dtype),
        grid_spec=pltpu.PrefetchScalarGridSpec(
            num_scalar_prefetch=0,
            grid=(steps,),                                  # partial last tile handled by Pallas
            in_specs=[
                pl.BlockSpec((1, H), lambda i: (0, 0)),     # weight row (resident)
                _row_tile_spec(tn, H, in_buffers),          # h_A row tile
                _row_tile_spec(tn, H, in_buffers),          # h_B row tile
            ],
            out_specs=pl.BlockSpec((tn, H), lambda i: (i, 0)),
        ),
        compiler_params=pltpu.CompilerParams(
            dimension_semantics=("parallel",),              # row axis -> 2-TC split on v7x
            vmem_limit_bytes=vmem_limit,
        ),
    )(w_row, h_a, h_b)


def _reference(h_a, h_b, weight, bias):
    s_a = h_a @ weight.T + bias                             # (N, 1)
    s_b = h_b @ weight.T + bias                             # (N, 1)
    scores = jnp.concatenate([s_a, s_b], axis=1)            # (N, 2)
    w = jax.nn.softmax(scores, axis=1)
    return w[:, 0:1] * h_a + w[:, 1:2] * h_b


if __name__ == "__main__":
    key = jax.random.PRNGKey(0)
    k1, k2, k3, k4 = jax.random.split(key, 4)

    N, H = 16, 128                                          # small shapes; H = 128 lanes
    h_a = jax.random.normal(k1, (N, H), dtype=jnp.float32)
    h_b = jax.random.normal(k2, (N, H), dtype=jnp.float32)

    # Deterministic nn.Linear(H, 1)-style init: U(-1/sqrt(H), 1/sqrt(H))
    bound = 1.0 / (H ** 0.5)
    weight = jax.random.uniform(k3, (1, H), jnp.float32, -bound, bound)
    bias = jax.random.uniform(k4, (1,), jnp.float32, -bound, bound)

    ref = _reference(h_a, h_b, weight, bias)

    # 1) Default (auto-sized) tiling.
    out = jax.block_until_ready(attention_fusion_mixer(h_a, h_b, weight, bias))
    assert out.shape == (N, H)
    assert jnp.allclose(out, ref, atol=1e-5, rtol=1e-5), "mismatch vs reference (auto tile)"

    # 2) Many-small-steps path: exercises the multi-step grid and the 3-deep
    #    input-buffering branch (steps=8, tiny tiles).
    N2 = 128
    ka, kb = jax.random.split(k1)
    h_a2 = jax.random.normal(ka, (N2, H), dtype=jnp.float32)
    h_b2 = jax.random.normal(kb, (N2, H), dtype=jnp.float32)
    ref2 = _reference(h_a2, h_b2, weight, bias)
    out2 = jax.block_until_ready(attention_fusion_mixer(h_a2, h_b2, weight, bias, tn=16))
    assert jnp.allclose(out2, ref2, atol=1e-5, rtol=1e-5), "mismatch vs reference (tn=16)"

    # 3) bf16 inputs: exercises the 16-row sublane-packing quantum and the
    #    input-dtype elementwise path (score reduction still accumulates in f32).
    h_a3 = h_a2.astype(jnp.bfloat16)
    h_b3 = h_b2.astype(jnp.bfloat16)
    ref3 = _reference(h_a3.astype(jnp.float32), h_b3.astype(jnp.float32), weight, bias)
    out3 = jax.block_until_ready(attention_fusion_mixer(h_a3, h_b3, weight, bias))
    assert out3.dtype == jnp.bfloat16
    assert jnp.allclose(out3.astype(jnp.float32), ref3, atol=2e-2, rtol=2e-2), \
        "mismatch vs reference (bf16)"

    print("KERNEL_OK")
</pallas_src>

<mosaic_0001>
module attributes {stable_mosaic.version = 11 : i64} {
  func.func @mixer_kernel(%arg0: i32, %arg1: memref<1x128xf32, #tpu.memory_space<vmem>>, %arg2: memref<8x128xf32, #tpu.memory_space<vmem>>, %arg3: memref<8x128xf32, #tpu.memory_space<vmem>>, %arg4: memref<8x128xf32, #tpu.memory_space<vmem>>) attributes {dimension_semantics = [#tpu.dimension_semantics<parallel>], iteration_bounds = array<i64: 2>, scalar_prefetch = 0 : i64, scratch_operands = 0 : i64, tpu.core_type = #tpu.core_type<tc>, window_params = [{pipeline_mode = #tpu.pipeline_mode<synchronous>, transform_indices = @transform_0, window_bounds = array<i64: 1, 128>}, {transform_indices = @transform_1, window_bounds = array<i64: 8, 128>}, {transform_indices = @transform_2, window_bounds = array<i64: 8, 128>}, {transform_indices = @transform_3, window_bounds = array<i64: 8, 128>}]} {
    %c0 = arith.constant 0 : index
    %c0_0 = arith.constant 0 : index
    %0 = vector.load %arg2[%c0, %c0_0] : memref<8x128xf32, #tpu.memory_space<vmem>>, vector<8x128xf32>
    %c0_1 = arith.constant 0 : index
    %c0_2 = arith.constant 0 : index
    %1 = vector.load %arg3[%c0_1, %c0_2] : memref<8x128xf32, #tpu.memory_space<vmem>>, vector<8x128xf32>
    %2 = arith.subf %0, %1 : vector<8x128xf32>
    %c0_3 = arith.constant 0 : index
    %c0_4 = arith.constant 0 : index
    %3 = vector.load %arg1[%c0_3, %c0_4] : memref<1x128xf32, #tpu.memory_space<vmem>>, vector<1x128xf32>
    %4 = vector.broadcast %3 : vector<1x128xf32> to vector<8x128xf32>
    %5 = arith.mulf %2, %4 : vector<8x128xf32>
    %cst = arith.constant dense<0.000000e+00> : vector<8xf32>
    %6 = vector.multi_reduction <add>, %5, %cst [1] : vector<8x128xf32> to vector<8xf32>
    %7 = vector.shape_cast %6 : vector<8xf32> to vector<8x1xf32>
    %8 = arith.negf %7 : vector<8x1xf32>
    %9 = math.exp %8 : vector<8x1xf32>
    %cst_5 = arith.constant 1.000000e+00 : f32
    %10 = vector.broadcast %cst_5 : f32 to vector<8x1xf32>
    %11 = arith.addf %10, %9 : vector<8x1xf32>
    %12 = arith.divf %10, %11 : vector<8x1xf32>
    %13 = vector.broadcast %12 : vector<8x1xf32> to vector<8x128xf32>
    %14 = arith.mulf %13, %2 : vector<8x128xf32>
    %15 = arith.addf %1, %14 : vector<8x128xf32>
    %c0_6 = arith.constant 0 : index
    %c0_7 = arith.constant 0 : index
    %16 = vector.load %arg4[%c0_6, %c0_7] : memref<8x128xf32, #tpu.memory_space<vmem>>, vector<8x128xf32>
    tpu.vector_store %arg4[%c0_6, %c0_7], %15 {strides = array<i32>} : memref<8x128xf32, #tpu.memory_space<vmem>>, vector<8x128xf32>,
    return
  }
  func.func @transform_0(%arg0: i32) -> (i32, i32) {
    %c0_i32 = arith.constant 0 : i32
    %c0_i32_0 = arith.constant 0 : i32
    %c0_i32_1 = arith.constant 0 : i32
    return %c0_i32, %c0_i32_0 : i32, i32
  }
  func.func @transform_1(%arg0: i32) -> (i32, i32) {
    %c0_i32 = arith.constant 0 : i32
    %c0_i32_0 = arith.constant 0 : i32
    return %arg0, %c0_i32 : i32, i32
  }
  func.func @transform_2(%arg0: i32) -> (i32, i32) {
    %c0_i32 = arith.constant 0 : i32
    %c0_i32_0 = arith.constant 0 : i32
    return %arg0, %c0_i32 : i32, i32
  }
  func.func @transform_3(%arg0: i32) -> (i32, i32) {
    %c0_i32 = arith.constant 0 : i32
    %c0_i32_0 = arith.constant 0 : i32
    return %arg0, %c0_i32 : i32, i32
  }
}

</mosaic_0001>

<llo_original>
// kernel: tpu_custom_call.1
$region0: #{tpu_custom_call.1}
  #allocation0 [shape = 'u32[]', space=smem, size = 0x4, offset = 0x4, fixed_abs, tag = 'smem constant byte address 0x4 - core index']
  #allocation1 [shape = 'u32[72,128]{1,0:T(1,128)}', space=vmem, size = 0x9000, scoped, tag = 'internal scratch']
  %s0 = inlined_call_operand.hbm [shape: f32[1,128], index: 0, kind: input, shape index: {}]
  %s1 = inlined_call_operand.hbm [shape: f32[16,128], index: 1, kind: input, shape index: {}]
  %s2 = inlined_call_operand.hbm [shape: f32[16,128], index: 2, kind: input, shape index: {}]
  %s3 = inlined_call_operand.hbm [shape: f32[16,128], index: 3, kind: output, shape index: {}]
  %s4 = sld [smem:[#allocation0]]
  $region57: #{tpu_custom_call.1} parent=0
    _
  %s6 = ssub.s32 1, %s4
  %s7 = scalar_select 0, %s6, %s4
  $region1: #{tpu_custom_call.1} parent=0
    #allocation2 [shape = 'u8[512]{0}', space=vmem, size = 0x400, scoped, tag = 'input window, operand 0, single buffered']
    #allocation3 [shape = 's32[2]{0}', space=sflag, size = 0x8, scoped, tag = 'scoped memory for tpu_custom_call.1']
    #allocation4 [shape = 's32[2]{0}', space=sflag, size = 0x8, scoped, tag = 'scoped memory for tpu_custom_call.1']
    #allocation5 [shape = 'u8[8192]{0}', space=vmem, size = 0x2000, scoped, tag = 'input window, operand 1']
    #allocation6 [shape = 's32[2]{0}', space=sflag, size = 0x8, scoped, tag = 'scoped memory for tpu_custom_call.1']
    #allocation7 [shape = 'u8[8192]{0}', space=vmem, size = 0x2000, scoped, tag = 'input window, operand 2']
    #allocation8 [shape = 'u8[8192]{0}', space=vmem, size = 0x2000, scoped, tag = 'output window, operand 0']
    %8 = vsyncpa [#allocation3], 0
    %9 = vsyncpa [#allocation6], 0
    %s10 = scalar_lea.sflag [#allocation6], 1
    %11 = vsyncpa %s10, 0
    %12 = vsyncpa [#allocation4], 0
    %s13 = scalar_lea.sflag [#allocation4], 1
    %14 = vsyncpa %s13, 0
    loop: start=0, step=1, limit=4
    $region2: #{tpu_custom_call.1} parent=1 // loop_pre_header
      _
    $region3: #{tpu_custom_call.1} parent=1 // loop_header
      %s16 = sphi 0, %s20
      %p17 = scmp.ge.s32.totalorder %s16, 4
      %s24 = sphi 0, %s24
      %s26 = sphi 0, %s24
      %s27 = sphi 0, %s26
      %s41 = sphi 0, %s27
      %s47 = sphi 0, %s49
      %s50 = sphi 0, %s47
      %s51 = sphi 0, %s50
      %s67 = sphi 0, %s51
      %s73 = sphi 0, %s75
      %s76 = sphi 0, %s73
      %s77 = sphi 0, %s76
      %s93 = sphi 0, %s77
      %s99 = sphi 0, %s101
      %s102 = sphi 0, %s99
      %s103 = sphi 0, %s102
      %s119 = sphi 0, %s103
    $region4: #{tpu_custom_call.1} parent=1 // loop_header_branch
      %19 = sbr.rel (%p17) target = $region8
    $region5: #{tpu_custom_call.1} parent=1 // loop_body
      %s21 = ssub.s32 %s16, 1
      %s22 = ssub.s32 %s16, 2
      %s23 = sadd.s32 %s16, 1
      %s25 = sadd.s32 %s24, 1
      %p28 = scmp.eq.s32.totalorder %s16, 1
      %p29 = scmp.ne.s32.totalorder %s24, %s26
      %p30 = scmp.eq.s32.totalorder %s16, 0
      %p31 = por %p29, %p30
      %p32 = scmp.ne.s32.totalorder %s24, %s26
      %p33 = scmp.eq.s32.totalorder %s21, 1
      %p34 = por %p32, %p33
      %p35 = scmp.ne.s32.totalorder %s26, %s27
      %p36 = scmp.eq.s32.totalorder %s21, 0
      %p37 = por %p35, %p36
      %p38 = scmp.ne.s32.totalorder %s26, %s27
      %p39 = scmp.eq.s32.totalorder %s22, 1
      %p40 = por %p38, %p39
      %p42 = scmp.ne.s32.totalorder %s27, %s41
      %p43 = scmp.eq.s32.totalorder %s22, 0
      %p44 = por %p42, %p43
      %s45 = ssub.s32 %s16, %s23
      %p46 = scmp.eq.s32.totalorder %s45, 0
      %s48 = sadd.s32 %s47, 1
      %s49 = scalar_select %p46, %s47, %s48
      %p52 = pneg %p46
      %p53 = scmp.eq.s32.totalorder %s16, 1
      %p54 = por %p52, %p53
      %p55 = scmp.ne.s32.totalorder %s47, %s50
      %p56 = scmp.eq.s32.totalorder %s16, 0
      %p57 = por %p55, %p56
      %p58 = scmp.ne.s32.totalorder %s47, %s50
      %p59 = scmp.eq.s32.totalorder %s21, 1
      %p60 = por %p58, %p59
      %p61 = scmp.ne.s32.totalorder %s50, %s51
      %p62 = scmp.eq.s32.totalorder %s21, 0
      %p63 = por %p61, %p62
      %p64 = scmp.ne.s32.totalorder %s50, %s51
      %p65 = scmp.eq.s32.totalorder %s22, 1
      %p66 = por %p64, %p65
      %p68 = scmp.ne.s32.totalorder %s51, %s67
      %p69 = scmp.eq.s32.totalorder %s22, 0
      %p70 = por %p68, %p69
      %s71 = ssub.s32 %s16, %s23
      %p72 = scmp.eq.s32.totalorder %s71, 0
      %s74 = sadd.s32 %s73, 1
      %s75 = scalar_select %p72, %s73, %s74
      %p78 = pneg %p72
      %p79 = scmp.eq.s32.totalorder %s16, 1
      %p80 = por %p78, %p79
      %p81 = scmp.ne.s32.totalorder %s73, %s76
      %p82 = scmp.eq.s32.totalorder %s16, 0
      %p83 = por %p81, %p82
      %p84 = scmp.ne.s32.totalorder %s73, %s76
      %p85 = scmp.eq.s32.totalorder %s21, 1
      %p86 = por %p84, %p85
      %p87 = scmp.ne.s32.totalorder %s76, %s77
      %p88 = scmp.eq.s32.totalorder %s21, 0
      %p89 = por %p87, %p88
      %p90 = scmp.ne.s32.totalorder %s76, %s77
      %p91 = scmp.eq.s32.totalorder %s22, 1
      %p92 = por %p90, %p91
      %p94 = scmp.ne.s32.totalorder %s77, %s93
      %p95 = scmp.eq.s32.totalorder %s22, 0
      %p96 = por %p94, %p95
      %s97 = ssub.s32 %s16, %s23
      %p98 = scmp.eq.s32.totalorder %s97, 0
      %s100 = sadd.s32 %s99, 1
      %s101 = scalar_select %p98, %s99, %s100
      %p104 = pneg %p98
      %p105 = scmp.eq.s32.totalorder %s16, 1
      %p106 = por %p104, %p105
      %p107 = scmp.ne.s32.totalorder %s99, %s102
      %p108 = scmp.eq.s32.totalorder %s16, 0
      %p109 = por %p107, %p108
      %p110 = scmp.ne.s32.totalorder %s99, %s102
      %p111 = scmp.eq.s32.totalorder %s21, 1
      %p112 = por %p110, %p111
      %p113 = scmp.ne.s32.totalorder %s102, %s103
      %p114 = scmp.eq.s32.totalorder %s21, 0
      %p115 = por %p113, %p114
      %p116 = scmp.ne.s32.totalorder %s102, %s103
      %p117 = scmp.eq.s32.totalorder %s22, 1
      %p118 = por %p116, %p117
      %p120 = scmp.ne.s32.totalorder %s103, %s119
      %p121 = scmp.eq.s32.totalorder %s22, 0
      %p122 = por %p120, %p121
      %p123 = scmp.le.s32.totalorder 1, %s16
      %p124 = scmp.lt.s32.totalorder %s16, 3
      %p125 = pnand %p123, %p124
      %p126 = pneg %p125
      // Predicated region
      $region9: #{tpu_custom_call.1} parent=5 // pred_check
        _
      $region10: #{tpu_custom_call.1} parent=5 // pred_check_branch
        %128 = sbr.rel (%p125) target = $region12
      $region11: #{tpu_custom_call.1} parent=5 // pred_region
        %s129 = ssub.s32 %s16, 1
        // Predicated region
        $region13: #{tpu_custom_call.1} parent=11 // pred_check
          %p130 = pneg %p37
        $region14: #{tpu_custom_call.1} parent=11 // pred_check_branch
          %132 = sbr.rel (%p130) target = $region16
        $region15: #{tpu_custom_call.1} parent=11 // pred_region
          %134 = vsyncadd [#allocation3], 0
          %s136 = sshll.u32 %s0, 4
          %s137 = int_to_ptr.hbm [resolvable:$true] %s136
          %s138 = sshll.u32 [#allocation2], 4
          %s139 = int_to_ptr.vmem [resolvable:$true] %s138
          %141 = dma.hbm_to_vmem [thread:$0]  %s137, 16, %s139, [#allocation3]
        $region16: #{tpu_custom_call.1} parent=11 // pred_fallthru
          _
      $region12: #{tpu_custom_call.1} parent=5 // pred_fallthru
        _
      %p142 = scmp.lt.s32.totalorder %s16, 2
      // Predicated region
      $region17: #{tpu_custom_call.1} parent=5 // pred_check
        %p143 = pneg %p142
      $region18: #{tpu_custom_call.1} parent=5 // pred_check_branch
        %145 = sbr.rel (%p143) target = $region20
      $region19: #{tpu_custom_call.1} parent=5 // pred_region
        // Predicated region
        $region21: #{tpu_custom_call.1} parent=19 // pred_check
          %p146 = pneg %p57
        $region22: #{tpu_custom_call.1} parent=19 // pred_check_branch
          %148 = sbr.rel (%p146) target = $region24
        $region23: #{tpu_custom_call.1} parent=19 // pred_region
          %s149 = sand.u32 %s16, 1
          %s150 = scalar_lea.sflag [#allocation6], %s149
          %s151 = sand.u32 %s47, 1
          %s152 = smul.addr %s151, 8
          %s153 = scalar_lea.vmem [#allocation5], %s152
          %155 = vsyncadd %s150, 0
          %s156 = smul.addr %s16, 8
          %s157 = scalar_lea.hbm %s1, %s156
          %s159 = sshll.u32 %s157, 4
          %s160 = int_to_ptr.hbm [resolvable:$true] %s159
          %s161 = sshll.u32 %s153, 4
          %s162 = int_to_ptr.vmem [resolvable:$true] %s161
          %164 = dma.hbm_to_vmem [thread:$0]  %s160, 128, %s162, %s150
        $region24: #{tpu_custom_call.1} parent=19 // pred_fallthru
          _
        // Predicated region
        $region25: #{tpu_custom_call.1} parent=19 // pred_check
          %p165 = pneg %p83
        $region26: #{tpu_custom_call.1} parent=19 // pred_check_branch
          %167 = sbr.rel (%p165) target = $region28
        $region27: #{tpu_custom_call.1} parent=19 // pred_region
          %s168 = sand.u32 %s16, 1
          %s169 = scalar_lea.sflag [#allocation6], %s168
          %s170 = sand.u32 %s73, 1
          %s171 = smul.addr %s170, 8
          %s172 = scalar_lea.vmem [#allocation7], %s171
          %174 = vsyncadd %s169, 0
          %s175 = smul.addr %s16, 8
          %s176 = scalar_lea.hbm %s2, %s175
          %s178 = sshll.u32 %s176, 4
          %s179 = int_to_ptr.hbm [resolvable:$true] %s178
          %s180 = sshll.u32 %s172, 4
          %s181 = int_to_ptr.vmem [resolvable:$true] %s180
          %183 = dma.hbm_to_vmem [thread:$0]  %s179, 128, %s181, %s169
        $region28: #{tpu_custom_call.1} parent=19 // pred_fallthru
          _
      $region20: #{tpu_custom_call.1} parent=5 // pred_fallthru
        _
      %p184 = scmp.le.s32.totalorder 1, %s16
      %p185 = scmp.lt.s32.totalorder %s16, 3
      %p186 = pnand %p184, %p185
      %p187 = pneg %p186
      // Predicated region
      $region29: #{tpu_custom_call.1} parent=5 // pred_check
        _
      $region30: #{tpu_custom_call.1} parent=5 // pred_check_branch
        %189 = sbr.rel (%p186) target = $region32
      $region31: #{tpu_custom_call.1} parent=5 // pred_region
        %s190 = ssub.s32 %s16, 1
        // Predicated region
        $region33: #{tpu_custom_call.1} parent=31 // pred_check
          %p191 = pneg %p37
        $region34: #{tpu_custom_call.1} parent=31 // pred_check_branch
          %193 = sbr.rel (%p191) target = $region36
        $region35: #{tpu_custom_call.1} parent=31 // pred_region
          %195 = dma.done [#allocation3], 16
        $region36: #{tpu_custom_call.1} parent=31 // pred_fallthru
          _
        %s196 = sand.u32 %s21, 1
        %s197 = scalar_lea.sflag [#allocation6], %s196
        %s198 = sand.u32 %s50, 1
        %s199 = smul.addr %s198, 8
        %s200 = scalar_lea.vmem [#allocation5], %s199
        // Predicated region
        $region37: #{tpu_custom_call.1} parent=31 // pred_check
          %p201 = pneg %p63
        $region38: #{tpu_custom_call.1} parent=31 // pred_check_branch
          %203 = sbr.rel (%p201) target = $region40
        $region39: #{tpu_custom_call.1} parent=31 // pred_region
          %205 = dma.done %s197, 128
        $region40: #{tpu_custom_call.1} parent=31 // pred_fallthru
          _
        %s206 = sand.u32 %s21, 1
        %s207 = scalar_lea.sflag [#allocation6], %s206
        %s208 = sand.u32 %s76, 1
        %s209 = smul.addr %s208, 8
        %s210 = scalar_lea.vmem [#allocation7], %s209
        // Predicated region
        $region41: #{tpu_custom_call.1} parent=31 // pred_check
          %p211 = pneg %p89
        $region42: #{tpu_custom_call.1} parent=31 // pred_check_branch
          %213 = sbr.rel (%p211) target = $region44
        $region43: #{tpu_custom_call.1} parent=31 // pred_region
          %215 = dma.done %s207, 128
        $region44: #{tpu_custom_call.1} parent=31 // pred_fallthru
          _
        %p216 = pneg %p37
        %p217 = pneg %p34
        %s218 = sand.u32 %s21, 1
        %s219 = scalar_lea.sflag [#allocation6], %s218
        %s220 = sand.u32 %s50, 1
        %s221 = smul.addr %s220, 8
        %s222 = scalar_lea.vmem [#allocation5], %s221
        %p223 = pneg %p63
        %p224 = pneg %p60
        %s225 = sand.u32 %s21, 1
        %s226 = scalar_lea.sflag [#allocation6], %s225
        %s227 = sand.u32 %s76, 1
        %s228 = smul.addr %s227, 8
        %s229 = scalar_lea.vmem [#allocation7], %s228
        %p230 = pneg %p89
        %p231 = pneg %p86
        %p232 = pneg %p115
        %p233 = pneg %p112
        %s234 = sand.u32 %s102, 1
        %s235 = scalar_lea.sflag [#allocation4], %s234
        %s236 = sand.u32 %s102, 1
        %s237 = smul.addr %s236, 8
        %s238 = scalar_lea.vmem [#allocation8], %s237
        %v239 = vld [vmem:[%s200] sm:$0xff]
        %v240 = vld [vmem:[%s210] sm:$0xff]
        %v241 = vsub.f32 %v239, %v240
        %v242 = vld [vmem:[#allocation2] sm:$0x1]
        %v244 = vperm.slane %v242, 0
        %v246 = vmul.f32 %v241, %v244
        %247 = vadd.xlane.f32.xlu0 %v246
        %v248 = vpop.xlane.xlu0 %247
        %v249 = vxor.u32 %v248, 2147483648
        %v250 = vmul.f32 %v249, 1.442695
        %v251 = vpow.pop %v250
        %v252 = vadd.f32 %v251, 1.0
        %v253 = vrcp.pop %v252
        %v254 = vmul.f32 %v252, %v253
        %v255 = vsub.f32 1.0, %v254
        %v256 = vmul.f32 %v253, %v255
        %v257 = vadd.f32 %v253, %v256
        %vm258 = vweird.f32 %v252
        %vm259 = vweird.f32 %v253
        %vm260 = vmor %vm258, %vm259
        %v261 = vsel %vm260, %v253, %v257
        %v262 = vand.u32 2147483647, %v252
        %vm263 = vcmp.eq.f32.partialorder %v262, 8.507059e+37
        %v264 = vand.u32 %v252, 2147483648
        %v265 = vor.u32 1.1754944e-38, %v264
        %v266 = vsel %vm263, %v265, %v261
        %v267 = vmul.f32 1.0, %v266
        %v268 = vmul.f32 %v267, %v241
        %v269 = vadd.f32 %v240, %v268
        %270 = vst [vmem:[%s238] sm:$0xff] %v269
        %s271 = sand.u32 %s102, 1
        %s272 = scalar_lea.sflag [#allocation4], %s271
        %s273 = sand.u32 %s102, 1
        %s274 = smul.addr %s273, 8
        %s275 = scalar_lea.vmem [#allocation8], %s274
        // Predicated region
        $region45: #{tpu_custom_call.1} parent=31 // pred_check
          %p276 = pneg %p112
        $region46: #{tpu_custom_call.1} parent=31 // pred_check_branch
          %278 = sbr.rel (%p276) target = $region48
        $region47: #{tpu_custom_call.1} parent=31 // pred_region
          %280 = vsyncadd %s272, 0
          %s281 = smul.addr %s21, 8
          %s282 = scalar_lea.hbm %s3, %s281
          %s284 = sshll.u32 %s275, 4
          %s285 = int_to_ptr.vmem [resolvable:$true] %s284
          %s286 = sshll.u32 %s282, 4
          %s287 = int_to_ptr.hbm [resolvable:$true] %s286
          %289 = dma.vmem_to_hbm [thread:$0]  %s285, 128, %s287, %s272
        $region48: #{tpu_custom_call.1} parent=31 // pred_fallthru
          _
      $region32: #{tpu_custom_call.1} parent=5 // pred_fallthru
        _
      %p290 = scmp.le.s32.totalorder 2, %s16
      // Predicated region
      $region49: #{tpu_custom_call.1} parent=5 // pred_check
        %p291 = pneg %p290
      $region50: #{tpu_custom_call.1} parent=5 // pred_check_branch
        %293 = sbr.rel (%p291) target = $region52
      $region51: #{tpu_custom_call.1} parent=5 // pred_region
        %s294 = ssub.s32 %s16, 2
        // Predicated region
        $region53: #{tpu_custom_call.1} parent=51 // pred_check
          %p295 = pneg %p118
        $region54: #{tpu_custom_call.1} parent=51 // pred_check_branch
          %297 = sbr.rel (%p295) target = $region56
        $region55: #{tpu_custom_call.1} parent=51 // pred_region
          %s298 = sand.u32 %s103, 1
          %s299 = scalar_lea.sflag [#allocation4], %s298
          %s300 = sand.u32 %s103, 1
          %s301 = smul.addr %s300, 8
          %s302 = scalar_lea.vmem [#allocation8], %s301
          %304 = dma.done %s299, 128
        $region56: #{tpu_custom_call.1} parent=51 // pred_fallthru
          _
      $region52: #{tpu_custom_call.1} parent=5 // pred_fallthru
        _
    $region6: #{tpu_custom_call.1} parent=1 // loop_footer
      %s20 = sadd.s32 1, %s16
    $region7: #{tpu_custom_call.1} parent=1 // loop_footer_branch
      %15 = sbr.rel target = $region3
    $region8: #{tpu_custom_call.1} parent=1 // loop_exit
      _
    %305 = vsyncpa [#allocation3], 1
    %s306 = scalar_lea.sflag [#allocation3], 1
    %307 = vsyncpa %s306, 1
    %308 = vsyncpa [#allocation6], 1
    %s309 = scalar_lea.sflag [#allocation6], 1
    %310 = vsyncpa %s309, 1
    %311 = vsyncpa [#allocation4], 1
    %s312 = scalar_lea.sflag [#allocation4], 1
    %313 = vsyncpa %s312, 1

</llo_original>
